<compile_context>
chip_gen: v7x
topology: tpu7x:2x2x1
jax: 0.10.0
libtpu: 0.0.40
codegen_flags: <defaults>
</compile_context>

<pallas_src>
import functools

import jax
import jax.numpy as jnp
from jax.experimental import pallas as pl
from jax.experimental.pallas import tpu as pltpu


def _round_up(x, m):
    return ((x + m - 1) // m) * m


def _choose_batch_tile(B, D, cdt_size, out_size):
    """Rows per grid step: derived from the number of steps (low padding waste),
    capped by a per-step VMEM budget keyed to D."""
    # Weights resident in VMEM (double-buffered by the pipeline): two Dx128 + four 128x128.
    weight_bytes = 2 * (2 * D * 128 + 4 * 128 * 128) * cdt_size
    # Per-row cost: double-buffered f32 input + output blocks, plus ~8 live f32
    # intermediates of width 128 inside the kernel body.
    per_row = 2 * 4 * D + 2 * out_size * D + 8 * 128 * 4
    budget = 12 * 1024 * 1024 - weight_bytes
    cap = max(8, min(1024, budget // per_row))
    # >= 2 grid steps whenever there is enough work, so both v7x TensorCores run.
    n_steps = max(pl.cdiv(B, cap), 2 if B >= 16 else 1)
    align = 16 if B >= 16 else 8  # 16 keeps the two in-kernel halves sublane-aligned
    return _round_up(pl.cdiv(B, n_steps), align)


def _make_kernel(tb, n_sub, compute_dtype):
    sub = tb // n_sub

    def kernel(x_ref,
               w1, b1, w2, b2, w3, b3, w4, b4, w5, b5, w6, b6,
               o_ref):
        def linear(h, w_ref, b_ref):
            # MXU matmul with f32 accumulation, f32 bias add.
            return jnp.dot(h, w_ref[...], preferred_element_type=jnp.float32) + b_ref[...]

        def relu_c(z):
            # ReLU in f32, cast down to the compute dtype for the next matmul.
            return jnp.maximum(z, 0.0).astype(compute_dtype)

        def sigmoid(z):
            # sigmoid(z) = 0.5*(1 + tanh(z/2)): one EUP op per element, no overflow.
            return 0.5 * jnp.tanh(0.5 * z) + 0.5

        def forward(rows):
            h = rows.astype(compute_dtype)                              # [sub, D]
            h = relu_c(linear(h, w1, b1))                               # [sub, 128]
            h = relu_c(linear(h, w2, b2))                               # [sub, 128] (74 padded)
            code = sigmoid(linear(h, w3, b3)).astype(compute_dtype)     # [sub, 128] (48 padded)
            h = relu_c(linear(code, w4, b4))                            # [sub, 128] (74 padded)
            h = relu_c(linear(h, w5, b5))                               # [sub, 128]
            return sigmoid(linear(h, w6, b6))                           # [sub, D]

        # Independent row-halves -> independent matmul chains in one basic block,
        # which the scheduler interleaves (fills MXU drain / VPU bubbles).
        for c in range(n_sub):
            lo = c * sub
            o_ref[lo:lo + sub, :] = forward(x_ref[lo:lo + sub, :]).astype(o_ref.dtype)

    return kernel


@functools.partial(jax.jit, static_argnames=("compute_dtype", "out_dtype", "batch_tile"))
def context_autoencoder_forward(x, params, *, compute_dtype=jnp.bfloat16,
                                out_dtype=None, batch_tile=None):
    """x: [B, D].  params: list of six (W, b) with W already [in, out]
    (i.e. the transpose of PyTorch's nn.Linear weight)."""
    B, D = x.shape
    out_dtype = x.dtype if out_dtype is None else out_dtype
    cdt_size = jnp.dtype(compute_dtype).itemsize
    out_size = jnp.dtype(out_dtype).itemsize

    if batch_tile is None:
        tb = _choose_batch_tile(B, D, cdt_size, out_size)
    else:
        tb = _round_up(batch_tile, 8)
    n_sub = 2 if (tb >= 64 and tb % 16 == 0) else 1

    grid = pl.cdiv(B, tb)
    B_pad = grid * tb

    # Batch is only padded when B % tb != 0 (then by < 16 rows per step); the feature
    # dim is never padded, so there is no extra pad/cast/slice HBM pass over x / output.
    x_in = x if B_pad == B else jnp.pad(x, ((0, B_pad - B), (0, 0)))

    # Zero-pad only the internal hidden dims (74 / 48) to 128 so every intermediate
    # matmul is lane-aligned.  Padded ROWS of the following layer's weight are zero,
    # so relu(0)=0 / sigmoid(0)=0.5 in padded lanes contributes nothing (exact math).
    n_layers = len(params)
    flat = []
    for li, (w, b) in enumerate(params):
        d_in, d_out = w.shape
        in_p = d_in if li == 0 else _round_up(d_in, 128)
        out_p = d_out if li == n_layers - 1 else _round_up(d_out, 128)
        if (in_p, out_p) == (d_in, d_out):
            w_pad = w.astype(compute_dtype)
        else:
            w_pad = jnp.zeros((in_p, out_p), compute_dtype)
            w_pad = w_pad.at[:d_in, :d_out].set(w.astype(compute_dtype))
        if out_p == d_out:
            b_pad = b.astype(jnp.float32).reshape(1, d_out)
        else:
            b_pad = jnp.zeros((1, out_p), jnp.float32)
            b_pad = b_pad.at[0, :d_out].set(b.astype(jnp.float32))
        flat += [w_pad, b_pad]

    # Weights/biases: whole (small) arrays resident in VMEM, same block every step.
    # (Could be single-buffered via pipeline_mode=pl.Buffered(1); left at the default.)
    in_specs = [pl.BlockSpec((tb, D), lambda i: (i, 0))]
    in_specs += [pl.BlockSpec(a.shape, lambda i: (0, 0)) for a in flat]
    out_spec = pl.BlockSpec((tb, D), lambda i: (i, 0))

    out = pl.pallas_call(
        _make_kernel(tb, n_sub, compute_dtype),
        out_shape=jax.ShapeDtypeStruct((B_pad, D), out_dtype),
        grid_spec=pltpu.PrefetchScalarGridSpec(
            num_scalar_prefetch=0,
            grid=(grid,),
            in_specs=in_specs,
            out_specs=out_spec,
        ),
        compiler_params=pltpu.CompilerParams(
            dimension_semantics=("parallel",)),
    )(x_in, *flat)

    return out if B_pad == B else out[:B]


def init_params(key, input_shape):
    """Deterministic init of the six Linear layers.
    Returns [(W_in_out, b), ...] with W already transposed to [in, out]."""
    dims = [(input_shape, 128), (128, 74), (74, 48),
            (48, 74), (74, 128), (128, input_shape)]
    params = []
    for (d_in, d_out) in dims:
        key, kw, kb = jax.random.split(key, 3)
        bound = 1.0 / jnp.sqrt(d_in)  # same scale as PyTorch's default Linear init
        w = jax.random.uniform(kw, (d_in, d_out), jnp.float32, -bound, bound)
        b = jax.random.uniform(kb, (d_out,), jnp.float32, -bound, bound)
        params.append((w, b))
    return params


def reference_forward(x, params):
    """Pure-JAX reference matching the PyTorch forward."""
    (w1, b1), (w2, b2), (w3, b3), (w4, b4), (w5, b5), (w6, b6) = params
    h = jax.nn.relu(x @ w1 + b1)
    h = jax.nn.relu(h @ w2 + b2)
    code = jax.nn.sigmoid(h @ w3 + b3)
    h = jax.nn.relu(code @ w4 + b4)
    h = jax.nn.relu(h @ w5 + b5)
    return jax.nn.sigmoid(h @ w6 + b6)


if __name__ == "__main__":
    key = jax.random.PRNGKey(0)
    key, kx1, kx2 = jax.random.split(key, 3)

    INPUT_SHAPE = 64  # kwargs['input_shape']
    params = init_params(key, INPUT_SHAPE)

    # Case 1: small batch -> single grid step, zero padding anywhere, f32 compute path.
    x_small = jax.random.normal(kx1, (8, INPUT_SHAPE), jnp.float32)
    ref_small = reference_forward(x_small, params)
    out_f32 = jax.block_until_ready(
        context_autoencoder_forward(x_small, params, compute_dtype=jnp.float32))
    assert out_f32.shape == (8, INPUT_SHAPE)
    assert jnp.allclose(out_f32, ref_small, atol=5e-3, rtol=5e-3), "f32 mismatch vs reference"

    # Case 2: larger batch -> 2 parallel grid steps (both v7x TCs), batch-pad path,
    # bf16 MXU path with in-kernel cast, two interleaved row-halves per tile.
    x_big = jax.random.normal(kx2, (200, INPUT_SHAPE), jnp.float32)
    ref_big = reference_forward(x_big, params)
    out_bf16 = jax.block_until_ready(context_autoencoder_forward(x_big, params))
    assert out_bf16.shape == (200, INPUT_SHAPE)
    assert jnp.allclose(out_bf16, ref_big, atol=5e-2, rtol=5e-2), "bf16 mismatch vs reference"

    print("KERNEL_OK")
</pallas_src>

<mosaic_0001>
module attributes {stable_mosaic.version = 11 : i64} {
  func.func @kernel(%arg0: i32, %arg1: memref<8x64xf32, #tpu.memory_space<vmem>>, %arg2: memref<64x128xf32, #tpu.memory_space<vmem>>, %arg3: memref<1x128xf32, #tpu.memory_space<vmem>>, %arg4: memref<128x128xf32, #tpu.memory_space<vmem>>, %arg5: memref<1x128xf32, #tpu.memory_space<vmem>>, %arg6: memref<128x128xf32, #tpu.memory_space<vmem>>, %arg7: memref<1x128xf32, #tpu.memory_space<vmem>>, %arg8: memref<128x128xf32, #tpu.memory_space<vmem>>, %arg9: memref<1x128xf32, #tpu.memory_space<vmem>>, %arg10: memref<128x128xf32, #tpu.memory_space<vmem>>, %arg11: memref<1x128xf32, #tpu.memory_space<vmem>>, %arg12: memref<128x64xf32, #tpu.memory_space<vmem>>, %arg13: memref<1x64xf32, #tpu.memory_space<vmem>>, %arg14: memref<8x64xf32, #tpu.memory_space<vmem>>) attributes {dimension_semantics = [#tpu.dimension_semantics<parallel>], iteration_bounds = array<i64: 1>, scalar_prefetch = 0 : i64, scratch_operands = 0 : i64, tpu.core_type = #tpu.core_type<tc>, window_params = [{transform_indices = @transform_0, window_bounds = array<i64: 8, 64>}, {pipeline_mode = #tpu.pipeline_mode<synchronous>, transform_indices = @transform_1, window_bounds = array<i64: 64, 128>}, {pipeline_mode = #tpu.pipeline_mode<synchronous>, transform_indices = @transform_2, window_bounds = array<i64: 1, 128>}, {pipeline_mode = #tpu.pipeline_mode<synchronous>, transform_indices = @transform_3, window_bounds = array<i64: 128, 128>}, {pipeline_mode = #tpu.pipeline_mode<synchronous>, transform_indices = @transform_4, window_bounds = array<i64: 1, 128>}, {pipeline_mode = #tpu.pipeline_mode<synchronous>, transform_indices = @transform_5, window_bounds = array<i64: 128, 128>}, {pipeline_mode = #tpu.pipeline_mode<synchronous>, transform_indices = @transform_6, window_bounds = array<i64: 1, 128>}, {pipeline_mode = #tpu.pipeline_mode<synchronous>, transform_indices = @transform_7, window_bounds = array<i64: 128, 128>}, {pipeline_mode = #tpu.pipeline_mode<synchronous>, transform_indices = @transform_8, window_bounds = array<i64: 1, 128>}, {pipeline_mode = #tpu.pipeline_mode<synchronous>, transform_indices = @transform_9, window_bounds = array<i64: 128, 128>}, {pipeline_mode = #tpu.pipeline_mode<synchronous>, transform_indices = @transform_10, window_bounds = array<i64: 1, 128>}, {pipeline_mode = #tpu.pipeline_mode<synchronous>, transform_indices = @transform_11, window_bounds = array<i64: 128, 64>}, {pipeline_mode = #tpu.pipeline_mode<synchronous>, transform_indices = @transform_12, window_bounds = array<i64: 1, 64>}, {transform_indices = @transform_13, window_bounds = array<i64: 8, 64>}]} {
    %c0 = arith.constant 0 : index
    %c0_0 = arith.constant 0 : index
    %0 = vector.load %arg1[%c0, %c0_0] : memref<8x64xf32, #tpu.memory_space<vmem>>, vector<8x64xf32>
    %c0_1 = arith.constant 0 : index
    %c0_2 = arith.constant 0 : index
    %1 = vector.load %arg2[%c0_1, %c0_2] : memref<64x128xf32, #tpu.memory_space<vmem>>, vector<64x128xf32>
    %cst = arith.constant dense<0.000000e+00> : vector<8x128xf32>
    %2 = tpu.matmul %0, %1, %cst {dimension_numbers = #tpu.dot_dimension_numbers<[1], [0], [0], [1], [0, 0, 1, 1], [], []>} : vector<8x64xf32>, vector<64x128xf32>, vector<8x128xf32> -> vector<8x128xf32>
    %c0_3 = arith.constant 0 : index
    %c0_4 = arith.constant 0 : index
    %3 = vector.load %arg3[%c0_3, %c0_4] : memref<1x128xf32, #tpu.memory_space<vmem>>, vector<1x128xf32>
    %4 = vector.broadcast %3 : vector<1x128xf32> to vector<8x128xf32>
    %5 = arith.addf %2, %4 : vector<8x128xf32>
    %cst_5 = arith.constant 0.000000e+00 : f32
    %6 = vector.broadcast %cst_5 : f32 to vector<8x128xf32>
    %7 = arith.maximumf %5, %6 : vector<8x128xf32>
    %c0_6 = arith.constant 0 : index
    %c0_7 = arith.constant 0 : index
    %8 = vector.load %arg4[%c0_6, %c0_7] : memref<128x128xf32, #tpu.memory_space<vmem>>, vector<128x128xf32>
    %cst_8 = arith.constant dense<0.000000e+00> : vector<8x128xf32>
    %9 = tpu.matmul %7, %8, %cst_8 {dimension_numbers = #tpu.dot_dimension_numbers<[1], [0], [0], [1], [0, 0, 1, 1], [], []>} : vector<8x128xf32>, vector<128x128xf32>, vector<8x128xf32> -> vector<8x128xf32>
    %c0_9 = arith.constant 0 : index
    %c0_10 = arith.constant 0 : index
    %10 = vector.load %arg5[%c0_9, %c0_10] : memref<1x128xf32, #tpu.memory_space<vmem>>, vector<1x128xf32>
    %11 = vector.broadcast %10 : vector<1x128xf32> to vector<8x128xf32>
    %12 = arith.addf %9, %11 : vector<8x128xf32>
    %cst_11 = arith.constant 0.000000e+00 : f32
    %13 = vector.broadcast %cst_11 : f32 to vector<8x128xf32>
    %14 = arith.maximumf %12, %13 : vector<8x128xf32>
    %c0_12 = arith.constant 0 : index
    %c0_13 = arith.constant 0 : index
    %15 = vector.load %arg6[%c0_12, %c0_13] : memref<128x128xf32, #tpu.memory_space<vmem>>, vector<128x128xf32>
    %cst_14 = arith.constant dense<0.000000e+00> : vector<8x128xf32>
    %16 = tpu.matmul %14, %15, %cst_14 {dimension_numbers = #tpu.dot_dimension_numbers<[1], [0], [0], [1], [0, 0, 1, 1], [], []>} : vector<8x128xf32>, vector<128x128xf32>, vector<8x128xf32> -> vector<8x128xf32>
    %c0_15 = arith.constant 0 : index
    %c0_16 = arith.constant 0 : index
    %17 = vector.load %arg7[%c0_15, %c0_16] : memref<1x128xf32, #tpu.memory_space<vmem>>, vector<1x128xf32>
    %18 = vector.broadcast %17 : vector<1x128xf32> to vector<8x128xf32>
    %19 = arith.addf %16, %18 : vector<8x128xf32>
    %cst_17 = arith.constant 5.000000e-01 : f32
    %20 = vector.broadcast %cst_17 : f32 to vector<8x128xf32>
    %21 = arith.mulf %20, %19 : vector<8x128xf32>
    %22 = math.tanh %21 : vector<8x128xf32>
    %cst_18 = arith.constant 5.000000e-01 : f32
    %23 = vector.broadcast %cst_18 : f32 to vector<8x128xf32>
    %24 = arith.mulf %23, %22 : vector<8x128xf32>
    %cst_19 = arith.constant 5.000000e-01 : f32
    %25 = vector.broadcast %cst_19 : f32 to vector<8x128xf32>
    %26 = arith.addf %24, %25 : vector<8x128xf32>
    %c0_20 = arith.constant 0 : index
    %c0_21 = arith.constant 0 : index
    %27 = vector.load %arg8[%c0_20, %c0_21] : memref<128x128xf32, #tpu.memory_space<vmem>>, vector<128x128xf32>
    %cst_22 = arith.constant dense<0.000000e+00> : vector<8x128xf32>
    %28 = tpu.matmul %26, %27, %cst_22 {dimension_numbers = #tpu.dot_dimension_numbers<[1], [0], [0], [1], [0, 0, 1, 1], [], []>} : vector<8x128xf32>, vector<128x128xf32>, vector<8x128xf32> -> vector<8x128xf32>
    %c0_23 = arith.constant 0 : index
    %c0_24 = arith.constant 0 : index
    %29 = vector.load %arg9[%c0_23, %c0_24] : memref<1x128xf32, #tpu.memory_space<vmem>>, vector<1x128xf32>
    %30 = vector.broadcast %29 : vector<1x128xf32> to vector<8x128xf32>
    %31 = arith.addf %28, %30 : vector<8x128xf32>
    %cst_25 = arith.constant 0.000000e+00 : f32
    %32 = vector.broadcast %cst_25 : f32 to vector<8x128xf32>
    %33 = arith.maximumf %31, %32 : vector<8x128xf32>
    %c0_26 = arith.constant 0 : index
    %c0_27 = arith.constant 0 : index
    %34 = vector.load %arg10[%c0_26, %c0_27] : memref<128x128xf32, #tpu.memory_space<vmem>>, vector<128x128xf32>
    %cst_28 = arith.constant dense<0.000000e+00> : vector<8x128xf32>
    %35 = tpu.matmul %33, %34, %cst_28 {dimension_numbers = #tpu.dot_dimension_numbers<[1], [0], [0], [1], [0, 0, 1, 1], [], []>} : vector<8x128xf32>, vector<128x128xf32>, vector<8x128xf32> -> vector<8x128xf32>
    %c0_29 = arith.constant 0 : index
    %c0_30 = arith.constant 0 : index
    %36 = vector.load %arg11[%c0_29, %c0_30] : memref<1x128xf32, #tpu.memory_space<vmem>>, vector<1x128xf32>
    %37 = vector.broadcast %36 : vector<1x128xf32> to vector<8x128xf32>
    %38 = arith.addf %35, %37 : vector<8x128xf32>
    %cst_31 = arith.constant 0.000000e+00 : f32
    %39 = vector.broadcast %cst_31 : f32 to vector<8x128xf32>
    %40 = arith.maximumf %38, %39 : vector<8x128xf32>
    %c0_32 = arith.constant 0 : index
    %c0_33 = arith.constant 0 : index
    %41 = vector.load %arg12[%c0_32, %c0_33] : memref<128x64xf32, #tpu.memory_space<vmem>>, vector<128x64xf32>
    %cst_34 = arith.constant dense<0.000000e+00> : vector<8x64xf32>
    %42 = tpu.matmul %40, %41, %cst_34 {dimension_numbers = #tpu.dot_dimension_numbers<[1], [0], [0], [1], [0, 0, 1, 1], [], []>} : vector<8x128xf32>, vector<128x64xf32>, vector<8x64xf32> -> vector<8x64xf32>
    %c0_35 = arith.constant 0 : index
    %c0_36 = arith.constant 0 : index
    %43 = vector.load %arg13[%c0_35, %c0_36] : memref<1x64xf32, #tpu.memory_space<vmem>>, vector<1x64xf32>
    %44 = vector.broadcast %43 : vector<1x64xf32> to vector<8x64xf32>
    %45 = arith.addf %42, %44 : vector<8x64xf32>
    %cst_37 = arith.constant 5.000000e-01 : f32
    %46 = vector.broadcast %cst_37 : f32 to vector<8x64xf32>
    %47 = arith.mulf %46, %45 : vector<8x64xf32>
    %48 = math.tanh %47 : vector<8x64xf32>
    %cst_38 = arith.constant 5.000000e-01 : f32
    %49 = vector.broadcast %cst_38 : f32 to vector<8x64xf32>
    %50 = arith.mulf %49, %48 : vector<8x64xf32>
    %cst_39 = arith.constant 5.000000e-01 : f32
    %51 = vector.broadcast %cst_39 : f32 to vector<8x64xf32>
    %52 = arith.addf %50, %51 : vector<8x64xf32>
    %c0_40 = arith.constant 0 : index
    %c0_41 = arith.constant 0 : index
    %53 = vector.load %arg14[%c0_40, %c0_41] : memref<8x64xf32, #tpu.memory_space<vmem>>, vector<8x64xf32>
    tpu.vector_store %arg14[%c0_40, %c0_41], %52 {strides = array<i32>} : memref<8x64xf32, #tpu.memory_space<vmem>>, vector<8x64xf32>,
    return
  }
  func.func @transform_0(%arg0: i32) -> (i32, i32) {
    %c0_i32 = arith.constant 0 : i32
    %c0_i32_0 = arith.constant 0 : i32
    return %arg0, %c0_i32 : i32, i32
  }
  func.func @transform_1(%arg0: i32) -> (i32, i32) {
    %c0_i32 = arith.constant 0 : i32
    %c0_i32_0 = arith.constant 0 : i32
    %c0_i32_1 = arith.constant 0 : i32
    return %c0_i32, %c0_i32_0 : i32, i32
  }
  func.func @transform_2(%arg0: i32) -> (i32, i32) {
    %c0_i32 = arith.constant 0 : i32
    %c0_i32_0 = arith.constant 0 : i32
    %c0_i32_1 = arith.constant 0 : i32
    return %c0_i32, %c0_i32_0 : i32, i32
  }
  func.func @transform_3(%arg0: i32) -> (i32, i32) {
    %c0_i32 = arith.constant 0 : i32
    %c0_i32_0 = arith.constant 0 : i32
    %c0_i32_1 = arith.constant 0 : i32
    return %c0_i32, %c0_i32_0 : i32, i32
  }
  func.func @transform_4(%arg0: i32) -> (i32, i32) {
    %c0_i32 = arith.constant 0 : i32
    %c0_i32_0 = arith.constant 0 : i32
    %c0_i32_1 = arith.constant 0 : i32
    return %c0_i32, %c0_i32_0 : i32, i32
  }
  func.func @transform_5(%arg0: i32) -> (i32, i32) {
    %c0_i32 = arith.constant 0 : i32
    %c0_i32_0 = arith.constant 0 : i32
    %c0_i32_1 = arith.constant 0 : i32
    return %c0_i32, %c0_i32_0 : i32, i32
  }
  func.func @transform_6(%arg0: i32) -> (i32, i32) {
    %c0_i32 = arith.constant 0 : i32
    %c0_i32_0 = arith.constant 0 : i32
    %c0_i32_1 = arith.constant 0 : i32
    return %c0_i32, %c0_i32_0 : i32, i32
  }
  func.func @transform_7(%arg0: i32) -> (i32, i32) {
    %c0_i32 = arith.constant 0 : i32
    %c0_i32_0 = arith.constant 0 : i32
    %c0_i32_1 = arith.constant 0 : i32
    return %c0_i32, %c0_i32_0 : i32, i32
  }
  func.func @transform_8(%arg0: i32) -> (i32, i32) {
    %c0_i32 = arith.constant 0 : i32
    %c0_i32_0 = arith.constant 0 : i32
    %c0_i32_1 = arith.constant 0 : i32
    return %c0_i32, %c0_i32_0 : i32, i32
  }
  func.func @transform_9(%arg0: i32) -> (i32, i32) {
    %c0_i32 = arith.constant 0 : i32
    %c0_i32_0 = arith.constant 0 : i32
    %c0_i32_1 = arith.constant 0 : i32
    return %c0_i32, %c0_i32_0 : i32, i32
  }
  func.func @transform_10(%arg0: i32) -> (i32, i32) {
    %c0_i32 = arith.constant 0 : i32
    %c0_i32_0 = arith.constant 0 : i32
    %c0_i32_1 = arith.constant 0 : i32
    return %c0_i32, %c0_i32_0 : i32, i32
  }
  func.func @transform_11(%arg0: i32) -> (i32, i32) {
    %c0_i32 = arith.constant 0 : i32
    %c0_i32_0 = arith.constant 0 : i32
    %c0_i32_1 = arith.constant 0 : i32
    return %c0_i32, %c0_i32_0 : i32, i32
  }
  func.func @transform_12(%arg0: i32) -> (i32, i32) {
    %c0_i32 = arith.constant 0 : i32
    %c0_i32_0 = arith.constant 0 : i32
    %c0_i32_1 = arith.constant 0 : i32
    return %c0_i32, %c0_i32_0 : i32, i32
  }
  func.func @transform_13(%arg0: i32) -> (i32, i32) {
    %c0_i32 = arith.constant 0 : i32
    %c0_i32_0 = arith.constant 0 : i32
    return %arg0, %c0_i32 : i32, i32
  }
}

</mosaic_0001>

<llo_original>
// kernel: context_autoencoder_forward.1
$region0: #{context_autoencoder_forward.1}
  #allocation0 [shape = 'u32[]', space=smem, size = 0x4, offset = 0x4, fixed_abs, tag = 'smem constant byte address 0x4 - core index']
  #allocation1 [shape = 'u32[144,128]{1,0:T(1,128)}', space=vmem, size = 0x12000, scoped, tag = 'internal scratch']
  %s0 = inlined_call_operand.vmem [shape: f32[8,64], index: 0, kind: input, shape index: {}]
  %s1 = inlined_call_operand.vmem [shape: f32[64,128], index: 1, kind: input, shape index: {}]
  %s2 = inlined_call_operand.vmem [shape: f32[1,128], index: 2, kind: input, shape index: {}]
  %s3 = inlined_call_operand.vmem [shape: f32[128,128], index: 3, kind: input, shape index: {}]
  %s4 = inlined_call_operand.vmem [shape: f32[1,128], index: 4, kind: input, shape index: {}]
  %s5 = inlined_call_operand.vmem [shape: f32[128,128], index: 5, kind: input, shape index: {}]
  %s6 = inlined_call_operand.vmem [shape: f32[1,128], index: 6, kind: input, shape index: {}]
  %s7 = inlined_call_operand.vmem [shape: f32[128,128], index: 7, kind: input, shape index: {}]
  %s8 = inlined_call_operand.vmem [shape: f32[1,128], index: 8, kind: input, shape index: {}]
  %s9 = inlined_call_operand.vmem [shape: f32[128,128], index: 9, kind: input, shape index: {}]
  %s10 = inlined_call_operand.vmem [shape: f32[1,128], index: 10, kind: input, shape index: {}]
  %s11 = inlined_call_operand.vmem [shape: f32[128,64], index: 11, kind: input, shape index: {}]
  %s12 = inlined_call_operand.vmem [shape: f32[1,64], index: 12, kind: input, shape index: {}]
  %s13 = inlined_call_operand.hbm [shape: f32[8,64], index: 13, kind: output, shape index: {}]
  %s14 = sld [smem:[#allocation0]]
  $region62: #{context_autoencoder_forward.1} parent=0
    _
  %s16 = ssub.s32 1, %s14
  %s17 = scalar_select 0, %s16, %s14
  $region1: #{context_autoencoder_forward.1} parent=0
    #allocation2 [shape = 'u8[4096]{0}', space=vmem, size = 0x1000, scoped, tag = 'output window, operand 0, single buffered']
    #allocation3 [shape = 's32[1]{0}', space=sflag, size = 0x4, scoped, tag = 'scoped memory for context_autoencoder_forward.1']
    %18 = vsyncpa [#allocation3], 0
    // Predicated region
    $region2: #{context_autoencoder_forward.1} parent=1 // pred_check
      _
    $region3: #{context_autoencoder_forward.1} parent=1 // pred_check_branch
      %20 = sbr.rel (0) target = $region5
    $region4: #{context_autoencoder_forward.1} parent=1 // pred_region
      _
    $region5: #{context_autoencoder_forward.1} parent=1 // pred_fallthru
      _
    // Predicated region
    $region6: #{context_autoencoder_forward.1} parent=1 // pred_check
      _
    $region7: #{context_autoencoder_forward.1} parent=1 // pred_check_branch
      %22 = sbr.rel (0) target = $region9
    $region8: #{context_autoencoder_forward.1} parent=1 // pred_region
      _
    $region9: #{context_autoencoder_forward.1} parent=1 // pred_fallthru
      _
    // Predicated region
    $region10: #{context_autoencoder_forward.1} parent=1 // pred_check
      _
    $region11: #{context_autoencoder_forward.1} parent=1 // pred_check_branch
      %24 = sbr.rel (0) target = $region13
    $region12: #{context_autoencoder_forward.1} parent=1 // pred_region
      _
    $region13: #{context_autoencoder_forward.1} parent=1 // pred_fallthru
      _
    // Predicated region
    $region14: #{context_autoencoder_forward.1} parent=1 // pred_check
      _
    $region15: #{context_autoencoder_forward.1} parent=1 // pred_check_branch
      %26 = sbr.rel (0) target = $region17
    $region16: #{context_autoencoder_forward.1} parent=1 // pred_region
      _
    $region17: #{context_autoencoder_forward.1} parent=1 // pred_fallthru
      _
    // Predicated region
    $region18: #{context_autoencoder_forward.1} parent=1 // pred_check
      _
    $region19: #{context_autoencoder_forward.1} parent=1 // pred_check_branch
      %28 = sbr.rel (0) target = $region21
    $region20: #{context_autoencoder_forward.1} parent=1 // pred_region
      _
    $region21: #{context_autoencoder_forward.1} parent=1 // pred_fallthru
      _
    // Predicated region
    $region22: #{context_autoencoder_forward.1} parent=1 // pred_check
      _
    $region23: #{context_autoencoder_forward.1} parent=1 // pred_check_branch
      %30 = sbr.rel (0) target = $region25
    $region24: #{context_autoencoder_forward.1} parent=1 // pred_region
      _
    $region25: #{context_autoencoder_forward.1} parent=1 // pred_fallthru
      _
    // Predicated region
    $region26: #{context_autoencoder_forward.1} parent=1 // pred_check
      _
    $region27: #{context_autoencoder_forward.1} parent=1 // pred_check_branch
      %32 = sbr.rel (0) target = $region29
    $region28: #{context_autoencoder_forward.1} parent=1 // pred_region
      _
    $region29: #{context_autoencoder_forward.1} parent=1 // pred_fallthru
      _
    // Predicated region
    $region30: #{context_autoencoder_forward.1} parent=1 // pred_check
      _
    $region31: #{context_autoencoder_forward.1} parent=1 // pred_check_branch
      %34 = sbr.rel (0) target = $region33
    $region32: #{context_autoencoder_forward.1} parent=1 // pred_region
      _
    $region33: #{context_autoencoder_forward.1} parent=1 // pred_fallthru
      _
    // Predicated region
    $region34: #{context_autoencoder_forward.1} parent=1 // pred_check
      _
    $region35: #{context_autoencoder_forward.1} parent=1 // pred_check_branch
      %36 = sbr.rel (0) target = $region37
    $region36: #{context_autoencoder_forward.1} parent=1 // pred_region
      _
    $region37: #{context_autoencoder_forward.1} parent=1 // pred_fallthru
      _
    // Predicated region
    $region38: #{context_autoencoder_forward.1} parent=1 // pred_check
      _
    $region39: #{context_autoencoder_forward.1} parent=1 // pred_check_branch
      %38 = sbr.rel (0) target = $region41
    $region40: #{context_autoencoder_forward.1} parent=1 // pred_region
      _
    $region41: #{context_autoencoder_forward.1} parent=1 // pred_fallthru
      _
    // Predicated region
    $region42: #{context_autoencoder_forward.1} parent=1 // pred_check
      _
    $region43: #{context_autoencoder_forward.1} parent=1 // pred_check_branch
      %40 = sbr.rel (0) target = $region45
    $region44: #{context_autoencoder_forward.1} parent=1 // pred_region
      _
    $region45: #{context_autoencoder_forward.1} parent=1 // pred_fallthru
      _
    // Predicated region
    $region46: #{context_autoencoder_forward.1} parent=1 // pred_check
      _
    $region47: #{context_autoencoder_forward.1} parent=1 // pred_check_branch
      %42 = sbr.rel (0) target = $region49
    $region48: #{context_autoencoder_forward.1} parent=1 // pred_region
      _
    $region49: #{context_autoencoder_forward.1} parent=1 // pred_fallthru
      _
    // Predicated region
    $region50: #{context_autoencoder_forward.1} parent=1 // pred_check
      _
    $region51: #{context_autoencoder_forward.1} parent=1 // pred_check_branch
      %44 = sbr.rel (0) target = $region53
    $region52: #{context_autoencoder_forward.1} parent=1 // pred_region
      _
    $region53: #{context_autoencoder_forward.1} parent=1 // pred_fallthru
      _
    %v45 = vld [vmem:[%s0] sm:$0xff]
    %v46 = vld [vmem:[%s1] sm:$0xff]
    %v47 = vld [vmem:[%s1 + $0x8] sm:$0xff]
    %v48 = vld [vmem:[%s1 + $0x10] sm:$0xff]
    %v49 = vld [vmem:[%s1 + $0x18] sm:$0xff]
    %v50 = vld [vmem:[%s1 + $0x20] sm:$0xff]
    %v51 = vld [vmem:[%s1 + $0x28] sm:$0xff]
    %v52 = vld [vmem:[%s1 + $0x30] sm:$0xff]
    %v53 = vld [vmem:[%s1 + $0x38] sm:$0xff]
    %v54 = vld [vmem:[%s2] sm:$0x1]
    %v56 = vlaneseq
    %v57 = vshrl.u32 %v56, 7
    %v58 = vsub.s32 0, %v57
    %v59 = vrot.slane %v54, %v58
    %vm61 = vcmask 523264
    %v63 = vsel %vm61, %v45, 0
    %65 = vmatprep.subr.mxu0 0.0
    %66 = vmatpush1.msra.mxu0 %v46
    %67 = vmatprep.subr.mxu0 0.0
    %68 = vmatpush1.msra.mxu0 %v47
    %69 = vmatprep.subr.mxu0 0.0
    %70 = vmatpush1.msra.mxu0 %v48
    %71 = vmatprep.subr.mxu0 0.0
    %72 = vmatpush1.msra.mxu0 %v49
    %73 = vmatprep.subr.mxu0 0.0
    %74 = vmatpush1.msra.mxu0 %v50
    %75 = vmatprep.subr.mxu0 0.0
    %76 = vmatpush1.msra.mxu0 %v51
    %77 = vmatprep.subr.mxu0 0.0
    %78 = vmatpush1.msra.mxu0 %v52
    %79 = vmatprep.subr.mxu0 0.0
    %80 = vmatpush1.msra.mxu0 %v53
    %81 = vmatprep.subr.mxu0 0.0
    %82 = vmatpush1.msra.mxu0 0.0
    %83 = vmatprep.subr.mxu0 0.0
    %84 = vmatpush1.msra.mxu0 0.0
    %85 = vmatprep.subr.mxu0 0.0
    %86 = vmatpush1.msra.mxu0 0.0
    %87 = vmatprep.subr.mxu0 0.0
    %88 = vmatpush1.msra.mxu0 0.0
    %89 = vmatprep.subr.mxu0 0.0
    %90 = vmatpush1.msra.mxu0 0.0
    %91 = vmatprep.subr.mxu0 0.0
    %92 = vmatpush1.msra.mxu0 0.0
    %93 = vmatprep.subr.mxu0 0.0
    %94 = vmatpush1.msra.mxu0 0.0
    %95 = vmatprep.subr.mxu0 0.0
    %96 = vmatpush1.msra.mxu0 0.0
    %97 = vmatprep.subr.mxu0 0.0
    %98 = vmatpush1.msra.mxu0 0.0
    %99 = vmatprep.subr.mxu0 0.0
    %100 = vmatpush1.msra.mxu0 0.0
    %101 = vmatprep.subr.mxu0 0.0
    %102 = vmatpush1.msra.mxu0 0.0
    %103 = vmatprep.subr.mxu0 0.0
    %104 = vmatpush1.msra.mxu0 0.0
    %105 = vmatprep.subr.mxu0 0.0
    %106 = vmatpush1.msra.mxu0 0.0
    %107 = vmatprep.subr.mxu0 0.0
    %108 = vmatpush1.msra.mxu0 0.0
    %109 = vmatprep.subr.mxu0 0.0
    %110 = vmatpush1.msra.mxu0 0.0
    %111 = vmatprep.subr.mxu0 0.0
    %112 = vmatpush1.msra.mxu0 0.0
    %113 = vmatprep.subr.mxu0 0.0
    %114 = vmatpush1.msra.mxu0 0.0
    %115 = vmatprep.subr.mxu0 0.0
    %116 = vmatpush1.msra.mxu0 0.0
    %117 = vmatprep.subr.mxu0 0.0
    %118 = vmatpush1.msra.mxu0 0.0
    %119 = vmatprep.subr.mxu0 0.0
    %120 = vmatpush1.msra.mxu0 0.0
    %121 = vmatprep.subr.mxu0 0.0
    %122 = vmatpush1.msra.mxu0 0.0
    %123 = vmatprep.subr.mxu0 0.0
    %124 = vmatpush1.msra.mxu0 0.0
    %125 = vmatprep.subr.mxu0 0.0
    %126 = vmatpush1.msra.mxu0 0.0
    %127 = vmatprep.subr.mxu0 0.0
    %128 = vmatpush1.msra.mxu0 0.0
    %129 = vmatprep.mubr.f32.mxu0 0.0
    %130 = vmatmul.mubr.f32.gmra.mrb[0].mxu0 %v63
    %v131 = vpop.f32.mrb[0].mxu0
    %v132 = vadd.f32 %v59, %v131
    %v133 = vpop.f32.mrb[0].mxu0
    %134 = vdwg.mxu0
    %v135 = vmax.f32 %v132, 0.0
    %v136 = vld [vmem:[%s3] sm:$0xff]
    %v137 = vld [vmem:[%s3 + $0x8] sm:$0xff]
    %v138 = vld [vmem:[%s3 + $0x10] sm:$0xff]
    %v139 = vld [vmem:[%s3 + $0x18] sm:$0xff]
    %v140 = vld [vmem:[%s3 + $0x20] sm:$0xff]
    %v141 = vld [vmem:[%s3 + $0x28] sm:$0xff]
    %v142 = vld [vmem:[%s3 + $0x30] sm:$0xff]
    %v143 = vld [vmem:[%s3 + $0x38] sm:$0xff]
    %v144 = vld [vmem:[%s3 + $0x40] sm:$0xff]
    %v145 = vld [vmem:[%s3 + $0x48] sm:$0xff]
    %v146 = vld [vmem:[%s3 + $0x50] sm:$0xff]
    %v147 = vld [vmem:[%s3 + $0x58] sm:$0xff]
    %v148 = vld [vmem:[%s3 + $0x60] sm:$0xff]
    %v149 = vld [vmem:[%s3 + $0x68] sm:$0xff]
    %v150 = vld [vmem:[%s3 + $0x70] sm:$0xff]
    %v151 = vld [vmem:[%s3 + $0x78] sm:$0xff]
    %v152 = vld [vmem:[%s4] sm:$0x1]
    %v154 = vlaneseq
    %v155 = vshrl.u32 %v154, 7
    %v156 = vsub.s32 0, %v155
    %v157 = vrot.slane %v152, %v156
    %159 = vmatprep.subr.mxu0 0.0
    %160 = vmatpush1.msra.mxu0 %v136
    %161 = vmatprep.subr.mxu0 0.0
    %162 = vmatpush1.msra.mxu0 %v137
    %163 = vmatprep.subr.mxu0 0.0
    %164 = vmatpush1.msra.mxu0 %v138
    %165 = vmatprep.subr.mxu0 0.0
    %166 = vmatpush1.msra.mxu0 %v139
    %167 = vmatprep.subr.mxu0 0.0
    %168 = vmatpush1.msra.mxu0 %v140
    %169 = vmatprep.subr.mxu0 0.0
    %170 = vmatpush1.msra.mxu0 %v141
    %171 = vmatprep.subr.mxu0 0.0
    %172 = vmatpush1.msra.mxu0 %v142
    %173 = vmatprep.subr.mxu0 0.0
    %174 = vmatpush1.msra.mxu0 %v143
    %175 = vmatprep.subr.mxu0 0.0
    %176 = vmatpush1.msra.mxu0 %v144
    %177 = vmatprep.subr.mxu0 0.0
    %178 = vmatpush1.msra.mxu0 %v145
    %179 = vmatprep.subr.mxu0 0.0
    %180 = vmatpush1.msra.mxu0 %v146
    %181 = vmatprep.subr.mxu0 0.0
    %182 = vmatpush1.msra.mxu0 %v147
    %183 = vmatprep.subr.mxu0 0.0
    %184 = vmatpush1.msra.mxu0 %v148
    %185 = vmatprep.subr.mxu0 0.0
    %186 = vmatpush1.msra.mxu0 %v149
    %187 = vmatprep.subr.mxu0 0.0
    %188 = vmatpush1.msra.mxu0 %v150
    %189 = vmatprep.subr.mxu0 0.0
    %190 = vmatpush1.msra.mxu0 %v151
    %191 = vmatprep.subr.mxu0 0.0
    %192 = vmatpush1.msra.mxu0 0.0
    %193 = vmatprep.subr.mxu0 0.0
    %194 = vmatpush1.msra.mxu0 0.0
    %195 = vmatprep.subr.mxu0 0.0
    %196 = vmatpush1.msra.mxu0 0.0
    %197 = vmatprep.subr.mxu0 0.0
    %198 = vmatpush1.msra.mxu0 0.0
    %199 = vmatprep.subr.mxu0 0.0
    %200 = vmatpush1.msra.mxu0 0.0
    %201 = vmatprep.subr.mxu0 0.0
    %202 = vmatpush1.msra.mxu0 0.0
    %203 = vmatprep.subr.mxu0 0.0
    %204 = vmatpush1.msra.mxu0 0.0
    %205 = vmatprep.subr.mxu0 0.0
    %206 = vmatpush1.msra.mxu0 0.0
    %207 = vmatprep.subr.mxu0 0.0
    %208 = vmatpush1.msra.mxu0 0.0
    %209 = vmatprep.subr.mxu0 0.0
    %210 = vmatpush1.msra.mxu0 0.0
    %211 = vmatprep.subr.mxu0 0.0
    %212 = vmatpush1.msra.mxu0 0.0
    %213 = vmatprep.subr.mxu0 0.0
    %214 = vmatpush1.msra.mxu0 0.0
    %215 = vmatprep.subr.mxu0 0.0
    %216 = vmatpush1.msra.mxu0 0.0
    %217 = vmatprep.subr.mxu0 0.0
    %218 = vmatpush1.msra.mxu0 0.0
    %219 = vmatprep.subr.mxu0 0.0
    %220 = vmatpush1.msra.mxu0 0.0
    %221 = vmatprep.subr.mxu0 0.0
    %222 = vmatpush1.msra.mxu0 0.0
    %223 = vmatprep.mubr.f32.mxu0 0.0
    %224 = vmatmul.mubr.f32.gmra.mrb[0].mxu0 %v135
    %v225 = vpop.f32.mrb[0].mxu0
    %v226 = vadd.f32 %v157, %v225
    %v227 = vpop.f32.mrb[0].mxu0
    %228 = vdwg.mxu0
    %v229 = vmax.f32 %v226, 0.0
    %v230 = vld [vmem:[%s5] sm:$0xff]
    %v231 = vld [vmem:[%s5 + $0x8] sm:$0xff]
    %v232 = vld [vmem:[%s5 + $0x10] sm:$0xff]
    %v233 = vld [vmem:[%s5 + $0x18] sm:$0xff]
    %v234 = vld [vmem:[%s5 + $0x20] sm:$0xff]
    %v235 = vld [vmem:[%s5 + $0x28] sm:$0xff]
    %v236 = vld [vmem:[%s5 + $0x30] sm:$0xff]
    %v237 = vld [vmem:[%s5 + $0x38] sm:$0xff]
    %v238 = vld [vmem:[%s5 + $0x40] sm:$0xff]
    %v239 = vld [vmem:[%s5 + $0x48] sm:$0xff]
    %v240 = vld [vmem:[%s5 + $0x50] sm:$0xff]
    %v241 = vld [vmem:[%s5 + $0x58] sm:$0xff]
    %v242 = vld [vmem:[%s5 + $0x60] sm:$0xff]
    %v243 = vld [vmem:[%s5 + $0x68] sm:$0xff]
    %v244 = vld [vmem:[%s5 + $0x70] sm:$0xff]
    %v245 = vld [vmem:[%s5 + $0x78] sm:$0xff]
    %v246 = vld [vmem:[%s6] sm:$0x1]
    %v248 = vlaneseq
    %v249 = vshrl.u32 %v248, 7
    %v250 = vsub.s32 0, %v249
    %v251 = vrot.slane %v246, %v250
    %253 = vmatprep.subr.mxu0 0.0
    %254 = vmatpush1.msra.mxu0 %v230
    %255 = vmatprep.subr.mxu0 0.0
    %256 = vmatpush1.msra.mxu0 %v231
    %257 = vmatprep.subr.mxu0 0.0
    %258 = vmatpush1.msra.mxu0 %v232
    %259 = vmatprep.subr.mxu0 0.0
    %260 = vmatpush1.msra.mxu0 %v233
    %261 = vmatprep.subr.mxu0 0.0
    %262 = vmatpush1.msra.mxu0 %v234
    %263 = vmatprep.subr.mxu0 0.0
    %264 = vmatpush1.msra.mxu0 %v235
    %265 = vmatprep.subr.mxu0 0.0
    %266 = vmatpush1.msra.mxu0 %v236
    %267 = vmatprep.subr.mxu0 0.0
    %268 = vmatpush1.msra.mxu0 %v237
    %269 = vmatprep.subr.mxu0 0.0
    %270 = vmatpush1.msra.mxu0 %v238
    %271 = vmatprep.subr.mxu0 0.0
    %272 = vmatpush1.msra.mxu0 %v239
    %273 = vmatprep.subr.mxu0 0.0
    %274 = vmatpush1.msra.mxu0 %v240
    %275 = vmatprep.subr.mxu0 0.0
    %276 = vmatpush1.msra.mxu0 %v241
    %277 = vmatprep.subr.mxu0 0.0
    %278 = vmatpush1.msra.mxu0 %v242
    %279 = vmatprep.subr.mxu0 0.0
    %280 = vmatpush1.msra.mxu0 %v243
    %281 = vmatprep.subr.mxu0 0.0
    %282 = vmatpush1.msra.mxu0 %v244
    %283 = vmatprep.subr.mxu0 0.0
    %284 = vmatpush1.msra.mxu0 %v245
    %285 = vmatprep.subr.mxu0 0.0
    %286 = vmatpush1.msra.mxu0 0.0
    %287 = vmatprep.subr.mxu0 0.0
    %288 = vmatpush1.msra.mxu0 0.0
    %289 = vmatprep.subr.mxu0 0.0
    %290 = vmatpush1.msra.mxu0 0.0
    %291 = vmatprep.subr.mxu0 0.0
    %292 = vmatpush1.msra.mxu0 0.0
    %293 = vmatprep.subr.mxu0 0.0
    %294 = vmatpush1.msra.mxu0 0.0
    %295 = vmatprep.subr.mxu0 0.0
    %296 = vmatpush1.msra.mxu0 0.0
    %297 = vmatprep.subr.mxu0 0.0
    %298 = vmatpush1.msra.mxu0 0.0
    %299 = vmatprep.subr.mxu0 0.0
    %300 = vmatpush1.msra.mxu0 0.0
    %301 = vmatprep.subr.mxu0 0.0
    %302 = vmatpush1.msra.mxu0 0.0
    %303 = vmatprep.subr.mxu0 0.0
    %304 = vmatpush1.msra.mxu0 0.0
    %305 = vmatprep.subr.mxu0 0.0
    %306 = vmatpush1.msra.mxu0 0.0
    %307 = vmatprep.subr.mxu0 0.0
    %308 = vmatpush1.msra.mxu0 0.0
    %309 = vmatprep.subr.mxu0 0.0
    %310 = vmatpush1.msra.mxu0 0.0
    %311 = vmatprep.subr.mxu0 0.0
    %312 = vmatpush1.msra.mxu0 0.0
    %313 = vmatprep.subr.mxu0 0.0
    %314 = vmatpush1.msra.mxu0 0.0
    %315 = vmatprep.subr.mxu0 0.0
    %316 = vmatpush1.msra.mxu0 0.0
    %317 = vmatprep.mubr.f32.mxu0 0.0
    %318 = vmatmul.mubr.f32.gmra.mrb[0].mxu0 %v229
    %v319 = vpop.f32.mrb[0].mxu0
    %v320 = vadd.f32 %v251, %v319
    %v321 = vpop.f32.mrb[0].mxu0
    %322 = vdwg.mxu0
    %v323 = vmul.f32 %v320, 0.5
    %v324 = vtanh.pop %v323
    %v325 = vmul.f32 %v324, 0.5
    %v326 = vadd.f32 %v325, 0.5
    %v327 = vld [vmem:[%s7] sm:$0xff]
    %v328 = vld [vmem:[%s7 + $0x8] sm:$0xff]
    %v329 = vld [vmem:[%s7 + $0x10] sm:$0xff]
    %v330 = vld [vmem:[%s7 + $0x18] sm:$0xff]
    %v331 = vld [vmem:[%s7 + $0x20] sm:$0xff]
    %v332 = vld [vmem:[%s7 + $0x28] sm:$0xff]
    %v333 = vld [vmem:[%s7 + $0x30] sm:$0xff]
    %v334 = vld [vmem:[%s7 + $0x38] sm:$0xff]
    %v335 = vld [vmem:[%s7 + $0x40] sm:$0xff]
    %v336 = vld [vmem:[%s7 + $0x48] sm:$0xff]
    %v337 = vld [vmem:[%s7 + $0x50] sm:$0xff]
    %v338 = vld [vmem:[%s7 + $0x58] sm:$0xff]
    %v339 = vld [vmem:[%s7 + $0x60] sm:$0xff]
    %v340 = vld [vmem:[%s7 + $0x68] sm:$0xff]
    %v341 = vld [vmem:[%s7 + $0x70] sm:$0xff]
    %v342 = vld [vmem:[%s7 + $0x78] sm:$0xff]
    %v343 = vld [vmem:[%s8] sm:$0x1]
    %v345 = vlaneseq
    %v346 = vshrl.u32 %v345, 7
    %v347 = vsub.s32 0, %v346
    %v348 = vrot.slane %v343, %v347
    %350 = vmatprep.subr.mxu0 0.0
    %351 = vmatpush1.msra.mxu0 %v327
    %352 = vmatprep.subr.mxu0 0.0
    %353 = vmatpush1.msra.mxu0 %v328
    %354 = vmatprep.subr.mxu0 0.0
    %355 = vmatpush1.msra.mxu0 %v329
    %356 = vmatprep.subr.mxu0 0.0
    %357 = vmatpush1.msra.mxu0 %v330
    %358 = vmatprep.subr.mxu0 0.0
    %359 = vmatpush1.msra.mxu0 %v331
    %360 = vmatprep.subr.mxu0 0.0
    %361 = vmatpush1.msra.mxu0 %v332
    %362 = vmatprep.subr.mxu0 0.0
    %363 = vmatpush1.msra.mxu0 %v333
    %364 = vmatprep.subr.mxu0 0.0
    %365 = vmatpush1.msra.mxu0 %v334
    %366 = vmatprep.subr.mxu0 0.0
    %367 = vmatpush1.msra.mxu0 %v335
    %368 = vmatprep.subr.mxu0 0.0
    %369 = vmatpush1.msra.mxu0 %v336
    %370 = vmatprep.subr.mxu0 0.0
    %371 = vmatpush1.msra.mxu0 %v337
    %372 = vmatprep.subr.mxu0 0.0
    %373 = vmatpush1.msra.mxu0 %v338
    %374 = vmatprep.subr.mxu0 0.0
    %375 = vmatpush1.msra.mxu0 %v339
    %376 = vmatprep.subr.mxu0 0.0
    %377 = vmatpush1.msra.mxu0 %v340
    %378 = vmatprep.subr.mxu0 0.0
    %379 = vmatpush1.msra.mxu0 %v341
    %380 = vmatprep.subr.mxu0 0.0
    %381 = vmatpush1.msra.mxu0 %v342
    %382 = vmatprep.subr.mxu0 0.0
    %383 = vmatpush1.msra.mxu0 0.0
    %384 = vmatprep.subr.mxu0 0.0
    %385 = vmatpush1.msra.mxu0 0.0
    %386 = vmatprep.subr.mxu0 0.0
    %387 = vmatpush1.msra.mxu0 0.0
    %388 = vmatprep.subr.mxu0 0.0
    %389 = vmatpush1.msra.mxu0 0.0
    %390 = vmatprep.subr.mxu0 0.0
    %391 = vmatpush1.msra.mxu0 0.0
    %392 = vmatprep.subr.mxu0 0.0
    %393 = vmatpush1.msra.mxu0 0.0
    %394 = vmatprep.subr.mxu0 0.0
    %395 = vmatpush1.msra.mxu0 0.0
    %396 = vmatprep.subr.mxu0 0.0
    %397 = vmatpush1.msra.mxu0 0.0
    %398 = vmatprep.subr.mxu0 0.0
    %399 = vmatpush1.msra.mxu0 0.0
    %400 = vmatprep.subr.mxu0 0.0
    %401 = vmatpush1.msra.mxu0 0.0
    %402 = vmatprep.subr.mxu0 0.0
    %403 = vmatpush1.msra.mxu0 0.0
    %404 = vmatprep.subr.mxu0 0.0
    %405 = vmatpush1.msra.mxu0 0.0
    %406 = vmatprep.subr.mxu0 0.0
    %407 = vmatpush1.msra.mxu0 0.0
    %408 = vmatprep.subr.mxu0 0.0
    %409 = vmatpush1.msra.mxu0 0.0
    %410 = vmatprep.subr.mxu0 0.0
    %411 = vmatpush1.msra.mxu0 0.0
    %412 = vmatprep.subr.mxu0 0.0
    %413 = vmatpush1.msra.mxu0 0.0
    %414 = vmatprep.mubr.f32.mxu0 0.0
    %415 = vmatmul.mubr.f32.gmra.mrb[0].mxu0 %v326
    %v416 = vpop.f32.mrb[0].mxu0
    %v417 = vadd.f32 %v348, %v416
    %v418 = vpop.f32.mrb[0].mxu0
    %419 = vdwg.mxu0
    %v420 = vmax.f32 %v417, 0.0
    %v421 = vld [vmem:[%s9] sm:$0xff]
    %v422 = vld [vmem:[%s9 + $0x8] sm:$0xff]
    %v423 = vld [vmem:[%s9 + $0x10] sm:$0xff]
    %v424 = vld [vmem:[%s9 + $0x18] sm:$0xff]
    %v425 = vld [vmem:[%s9 + $0x20] sm:$0xff]
    %v426 = vld [vmem:[%s9 + $0x28] sm:$0xff]
    %v427 = vld [vmem:[%s9 + $0x30] sm:$0xff]
    %v428 = vld [vmem:[%s9 + $0x38] sm:$0xff]
    %v429 = vld [vmem:[%s9 + $0x40] sm:$0xff]
    %v430 = vld [vmem:[%s9 + $0x48] sm:$0xff]
    %v431 = vld [vmem:[%s9 + $0x50] sm:$0xff]
    %v432 = vld [vmem:[%s9 + $0x58] sm:$0xff]
    %v433 = vld [vmem:[%s9 + $0x60] sm:$0xff]
    %v434 = vld [vmem:[%s9 + $0x68] sm:$0xff]
    %v435 = vld [vmem:[%s9 + $0x70] sm:$0xff]
    %v436 = vld [vmem:[%s9 + $0x78] sm:$0xff]
    %v437 = vld [vmem:[%s10] sm:$0x1]
    %v439 = vlaneseq
    %v440 = vshrl.u32 %v439, 7
    %v441 = vsub.s32 0, %v440
    %v442 = vrot.slane %v437, %v441
    %444 = vmatprep.subr.mxu0 0.0
    %445 = vmatpush1.msra.mxu0 %v421
    %446 = vmatprep.subr.mxu0 0.0
    %447 = vmatpush1.msra.mxu0 %v422
    %448 = vmatprep.subr.mxu0 0.0
    %449 = vmatpush1.msra.mxu0 %v423
    %450 = vmatprep.subr.mxu0 0.0
    %451 = vmatpush1.msra.mxu0 %v424
    %452 = vmatprep.subr.mxu0 0.0
    %453 = vmatpush1.msra.mxu0 %v425
    %454 = vmatprep.subr.mxu0 0.0
    %455 = vmatpush1.msra.mxu0 %v426
    %456 = vmatprep.subr.mxu0 0.0
    %457 = vmatpush1.msra.mxu0 %v427
    %458 = vmatprep.subr.mxu0 0.0
    %459 = vmatpush1.msra.mxu0 %v428
    %460 = vmatprep.subr.mxu0 0.0
    %461 = vmatpush1.msra.mxu0 %v429
    %462 = vmatprep.subr.mxu0 0.0
    %463 = vmatpush1.msra.mxu0 %v430
    %464 = vmatprep.subr.mxu0 0.0
    %465 = vmatpush1.msra.mxu0 %v431
    %466 = vmatprep.subr.mxu0 0.0
    %467 = vmatpush1.msra.mxu0 %v432
    %468 = vmatprep.subr.mxu0 0.0
    %469 = vmatpush1.msra.mxu0 %v433
    %470 = vmatprep.subr.mxu0 0.0
    %471 = vmatpush1.msra.mxu0 %v434
    %472 = vmatprep.subr.mxu0 0.0
    %473 = vmatpush1.msra.mxu0 %v435
    %474 = vmatprep.subr.mxu0 0.0
    %475 = vmatpush1.msra.mxu0 %v436
    %476 = vmatprep.subr.mxu0 0.0
    %477 = vmatpush1.msra.mxu0 0.0
    %478 = vmatprep.subr.mxu0 0.0
    %479 = vmatpush1.msra.mxu0 0.0
    %480 = vmatprep.subr.mxu0 0.0
    %481 = vmatpush1.msra.mxu0 0.0
    %482 = vmatprep.subr.mxu0 0.0
    %483 = vmatpush1.msra.mxu0 0.0
    %484 = vmatprep.subr.mxu0 0.0
    %485 = vmatpush1.msra.mxu0 0.0
    %486 = vmatprep.subr.mxu0 0.0
    %487 = vmatpush1.msra.mxu0 0.0
    %488 = vmatprep.subr.mxu0 0.0
    %489 = vmatpush1.msra.mxu0 0.0
    %490 = vmatprep.subr.mxu0 0.0
    %491 = vmatpush1.msra.mxu0 0.0
    %492 = vmatprep.subr.mxu0 0.0
    %493 = vmatpush1.msra.mxu0 0.0
    %494 = vmatprep.subr.mxu0 0.0
    %495 = vmatpush1.msra.mxu0 0.0
    %496 = vmatprep.subr.mxu0 0.0
    %497 = vmatpush1.msra.mxu0 0.0
    %498 = vmatprep.subr.mxu0 0.0
    %499 = vmatpush1.msra.mxu0 0.0
    %500 = vmatprep.subr.mxu0 0.0
    %501 = vmatpush1.msra.mxu0 0.0
    %502 = vmatprep.subr.mxu0 0.0
    %503 = vmatpush1.msra.mxu0 0.0
    %504 = vmatprep.subr.mxu0 0.0
    %505 = vmatpush1.msra.mxu0 0.0
    %506 = vmatprep.subr.mxu0 0.0
    %507 = vmatpush1.msra.mxu0 0.0
    %508 = vmatprep.mubr.f32.mxu0 0.0
    %509 = vmatmul.mubr.f32.gmra.mrb[0].mxu0 %v420
    %v510 = vpop.f32.mrb[0].mxu0
    %v511 = vadd.f32 %v442, %v510
    %v512 = vpop.f32.mrb[0].mxu0
    %513 = vdwg.mxu0
    %v514 = vmax.f32 %v511, 0.0
    %v515 = vld [vmem:[%s11] sm:$0xff]
    %v516 = vld [vmem:[%s11 + $0x8] sm:$0xff]
    %v517 = vld [vmem:[%s11 + $0x10] sm:$0xff]
    %v518 = vld [vmem:[%s11 + $0x18] sm:$0xff]
    %v519 = vld [vmem:[%s11 + $0x20] sm:$0xff]
    %v520 = vld [vmem:[%s11 + $0x28] sm:$0xff]
    %v521 = vld [vmem:[%s11 + $0x30] sm:$0xff]
    %v522 = vld [vmem:[%s11 + $0x38] sm:$0xff]
    %v523 = vld [vmem:[%s11 + $0x40] sm:$0xff]
    %v524 = vld [vmem:[%s11 + $0x48] sm:$0xff]
    %v525 = vld [vmem:[%s11 + $0x50] sm:$0xff]
    %v526 = vld [vmem:[%s11 + $0x58] sm:$0xff]
    %v527 = vld [vmem:[%s11 + $0x60] sm:$0xff]
    %v528 = vld [vmem:[%s11 + $0x68] sm:$0xff]
    %v529 = vld [vmem:[%s11 + $0x70] sm:$0xff]
    %v530 = vld [vmem:[%s11 + $0x78] sm:$0xff]
    %v531 = vld [vmem:[%s12] sm:$0x1]
    %v533 = vlaneseq
    %v534 = vshrl.u32 %v533, 7
    %v535 = vsub.s32 0, %v534
    %v536 = vrot.slane %v531, %v535
    %538 = vmatprep.subr.mxu0 0.0
    %539 = vmatpush1.msra.mxu0 %v515
    %540 = vmatprep.subr.mxu0 0.0
    %541 = vmatpush1.msra.mxu0 %v516
    %542 = vmatprep.subr.mxu0 0.0
    %543 = vmatpush1.msra.mxu0 %v517
    %544 = vmatprep.subr.mxu0 0.0
    %545 = vmatpush1.msra.mxu0 %v518
    %546 = vmatprep.subr.mxu0 0.0
    %547 = vmatpush1.msra.mxu0 %v519
    %548 = vmatprep.subr.mxu0 0.0
    %549 = vmatpush1.msra.mxu0 %v520
    %550 = vmatprep.subr.mxu0 0.0
    %551 = vmatpush1.msra.mxu0 %v521
    %552 = vmatprep.subr.mxu0 0.0
    %553 = vmatpush1.msra.mxu0 %v522
    %554 = vmatprep.subr.mxu0 0.0
    %555 = vmatpush1.msra.mxu0 %v523
    %556 = vmatprep.subr.mxu0 0.0
    %557 = vmatpush1.msra.mxu0 %v524
    %558 = vmatprep.subr.mxu0 0.0
    %559 = vmatpush1.msra.mxu0 %v525
    %560 = vmatprep.subr.mxu0 0.0
    %561 = vmatpush1.msra.mxu0 %v526
    %562 = vmatprep.subr.mxu0 0.0
    %563 = vmatpush1.msra.mxu0 %v527
    %564 = vmatprep.subr.mxu0 0.0
    %565 = vmatpush1.msra.mxu0 %v528
    %566 = vmatprep.subr.mxu0 0.0
    %567 = vmatpush1.msra.mxu0 %v529
    %568 = vmatprep.subr.mxu0 0.0
    %569 = vmatpush1.msra.mxu0 %v530
    %570 = vmatprep.subr.mxu0 0.0
    %571 = vmatpush1.msra.mxu0 0.0
    %572 = vmatprep.subr.mxu0 0.0
    %573 = vmatpush1.msra.mxu0 0.0
    %574 = vmatprep.subr.mxu0 0.0
    %575 = vmatpush1.msra.mxu0 0.0
    %576 = vmatprep.subr.mxu0 0.0
    %577 = vmatpush1.msra.mxu0 0.0
    %578 = vmatprep.subr.mxu0 0.0
    %579 = vmatpush1.msra.mxu0 0.0
    %580 = vmatprep.subr.mxu0 0.0
    %581 = vmatpush1.msra.mxu0 0.0
    %582 = vmatprep.subr.mxu0 0.0
    %583 = vmatpush1.msra.mxu0 0.0
    %584 = vmatprep.subr.mxu0 0.0
    %585 = vmatpush1.msra.mxu0 0.0
    %586 = vmatprep.subr.mxu0 0.0
    %587 = vmatpush1.msra.mxu0 0.0
    %588 = vmatprep.subr.mxu0 0.0
    %589 = vmatpush1.msra.mxu0 0.0
    %590 = vmatprep.subr.mxu0 0.0
    %591 = vmatpush1.msra.mxu0 0.0
    %592 = vmatprep.subr.mxu0 0.0
    %593 = vmatpush1.msra.mxu0 0.0
    %594 = vmatprep.subr.mxu0 0.0
    %595 = vmatpush1.msra.mxu0 0.0
    %596 = vmatprep.subr.mxu0 0.0
    %597 = vmatpush1.msra.mxu0 0.0
    %598 = vmatprep.subr.mxu0 0.0
    %599 = vmatpush1.msra.mxu0 0.0
    %600 = vmatprep.subr.mxu0 0.0
    %601 = vmatpush1.msra.mxu0 0.0
    %602 = vmatprep.mubr.f32.mxu0 0.0
    %603 = vmatmul.mubr.f32.gmra.mrb[0].mxu0 %v514
    %v604 = vpop.f32.mrb[0].mxu0
    %v605 = vadd.f32 %v536, %v604
    %v606 = vpop.f32.mrb[0].mxu0
    %607 = vdwg.mxu0
    %v608 = vmul.f32 %v605, 0.5
    %v609 = vtanh.pop %v608
    %v610 = vmul.f32 %v609, 0.5
    %v611 = vadd.f32 %v610, 0.5
    %612 = vst.msk [vmem:[#allocation2] sm:$0xff] %vm61, %v611
    // Predicated region
    $region54: #{context_autoencoder_forward.1} parent=1 // pred_check
      _
    $region55: #{context_autoencoder_forward.1} parent=1 // pred_check_branch
      %614 = sbr.rel (0) target = $region57
    $region56: #{context_autoencoder_forward.1} parent=1 // pred_region
      %s616 = ssub.s32 128, 128
      %617 = vsyncadd [#allocation3], %s616
      %s619 = sshll.u32 [#allocation2], 4
      %s620 = int_to_ptr.vmem [resolvable:$true] %s619
      %622 = dma.vmem_to_hbm [thread:$0]  %s620, 128, %s13, [#allocation3]
    $region57: #{context_autoencoder_forward.1} parent=1 // pred_fallthru
      _
    // Predicated region
    $region58: #{context_autoencoder_forward.1} parent=1 // pred_check
      _
    $region59: #{context_autoencoder_forward.1} parent=1 // pred_check_branch
      %624 = sbr.rel (0) target = $region61
    $region60: #{context_autoencoder_forward.1} parent=1 // pred_region
      %625 = dma.done [#allocation3], 128
    $region61: #{context_autoencoder_forward.1} parent=1 // pred_fallthru
      _
    %626 = vsyncpa [#allocation3], 1

</llo_original>
